<compile_context>
chip_gen: v6e
topology: v6e:2x2x1
jax: 0.10.0
libtpu: 0.0.40
codegen_flags: <defaults>
</compile_context>

<pallas_src>
import functools
import math

import jax
import jax.numpy as jnp
from jax.experimental import pallas as pl
from jax.experimental.pallas import tpu as pltpu


def _round_up(x: int, m: int) -> int:
    return ((x + m - 1) // m) * m


def _kernel_aligned(time_ref, freqs_ref, out_ref, *, half_dim: int):
    # time_ref:  (block_b, 1)       f32 VMEM
    # freqs_ref: (1, half_dim)      f32 VMEM (same block every grid step -> resident)
    # out_ref:   (block_b, 2*half)  VMEM
    # half_dim % 128 == 0 here, so both half-row stores are lane-aligned (unmasked vst).
    args = time_ref[...] * freqs_ref[...]                 # (block_b, half_dim)  [VPU broadcast mul]
    out_ref[:, :half_dim] = jnp.sin(args).astype(out_ref.dtype)   # [VPU polynomial]
    out_ref[:, half_dim:] = jnp.cos(args).astype(out_ref.dtype)   # [VPU polynomial]


def _kernel_phase(time_ref, freqs_full_ref, out_ref, *, half_dim: int):
    # time_ref:       (block_b, 1)  f32 VMEM
    # freqs_full_ref: (1, dim)      f32 VMEM = tile(freqs, 2)
    # out_ref:        (block_b, dim) VMEM
    # Single full-width lane-dense store: cos(x) == sin(x + pi/2).
    dim = freqs_full_ref.shape[-1]
    lane = jax.lax.broadcasted_iota(jnp.int32, (1, dim), 1)
    phase = jnp.where(lane < half_dim, jnp.float32(0.0), jnp.float32(0.5 * math.pi))
    args = time_ref[...] * freqs_full_ref[...] + phase    # (block_b, dim)  [VPU]
    out_ref[...] = jnp.sin(args).astype(out_ref.dtype)    # one unmasked full-row store per 8 rows


def sinusoidal_position_embeddings(
    time: jax.Array,
    dim: int,
    *,
    block_b: int | None = None,
    out_dtype=jnp.float32,
) -> jax.Array:
    """JAX/Pallas equivalent of SinusoidalPositionEmbeddings(dim)(time).

    time: (B,) float array.  Returns (B, dim) array of `out_dtype` (default f32).
    """
    assert dim % 2 == 0, "dim must be even"
    assert dim >= 4, "dim must be >= 4 (half_dim - 1 would be zero otherwise)"
    half_dim = dim // 2
    neg_scale = -math.log(10000.0) / (half_dim - 1)

    b = time.shape[0]
    time_2d = time.astype(jnp.float32).reshape(b, 1)

    # Frequencies computed once with XLA's exp (bit-identical to the reference);
    # tiny (1, w) row that stays resident in VMEM across all grid steps.
    freqs = jnp.exp(jnp.arange(half_dim, dtype=jnp.float32) * jnp.float32(neg_scale))

    halves_lane_aligned = (half_dim % 128 == 0)
    if halves_lane_aligned:
        freqs_row = freqs.reshape(1, half_dim)
        kernel = functools.partial(_kernel_aligned, half_dim=half_dim)
    else:
        freqs_row = jnp.tile(freqs, 2).reshape(1, dim)
        kernel = functools.partial(_kernel_phase, half_dim=half_dim)

    out_itemsize = jnp.dtype(out_dtype).itemsize
    if block_b is None:
        # Target ~1 MiB output tiles (steep part of the HBM roofline curve);
        # keep grid >= 2 for b >= 16 so both v7x TensorCores get work.
        rows_1mb = max(8, (((1 << 20) // max(dim * out_itemsize, 1)) // 8) * 8)
        block_b = min(rows_1mb, _round_up(b, 8))
        if b >= 16:
            block_b = min(block_b, _round_up(pl.cdiv(b, 2), 8))
        block_b = max(8, (block_b // 8) * 8)

    grid = (pl.cdiv(b, block_b),)  # partial last block handled by Pallas (masked writeback)

    # sin/cos lower to VPU range-reduction + polynomials (~30 VALU ops/elem),
    # not EUP transcendentals -> count them as flops.
    cost = pl.CostEstimate(
        flops=32 * b * dim,
        transcendentals=0,
        bytes_accessed=4 * b + 4 * int(freqs_row.size) + b * dim * out_itemsize,
    )

    out = pl.pallas_call(
        kernel,
        out_shape=jax.ShapeDtypeStruct((b, dim), out_dtype),
        grid=grid,
        in_specs=[
            pl.BlockSpec((block_b, 1), lambda i: (i, 0)),
            pl.BlockSpec((1, freqs_row.shape[1]), lambda i: (0, 0)),
        ],
        out_specs=pl.BlockSpec((block_b, dim), lambda i: (i, 0)),
        compiler_params=pltpu.CompilerParams(
            dimension_semantics=("parallel",),
        ),
        cost_estimate=cost,
    )(time_2d, freqs_row)
    return out


def _reference(time: jax.Array, dim: int) -> jax.Array:
    half_dim = dim // 2
    emb = math.log(10000.0) / (half_dim - 1)
    emb = jnp.exp(jnp.arange(half_dim, dtype=jnp.float32) * -emb)
    emb = time.astype(jnp.float32)[:, None] * emb[None, :]
    return jnp.concatenate([jnp.sin(emb), jnp.cos(emb)], axis=-1)


if __name__ == "__main__":
    key = jax.random.PRNGKey(0)

    # Case 1: module-typical small shape (dim=32 -> half=16, phase-trick path).
    batch = 8
    dim = 32
    time = jax.random.uniform(key, (batch,), dtype=jnp.float32, minval=0.0, maxval=1000.0)
    out = jax.block_until_ready(sinusoidal_position_embeddings(time, dim))
    ref = _reference(time, dim)
    assert out.shape == (batch, dim), out.shape
    assert out.dtype == jnp.float32, out.dtype
    # Phase path: cos(x) == sin(x + pi/2) adds ~ulp(|x|) phase rounding for t up to 1000.
    assert jnp.allclose(out, ref, atol=5e-4, rtol=0.0), float(jnp.max(jnp.abs(out - ref)))

    # Case 2: lane-aligned halves (dim=256 -> half=128) + partial last block (b=13).
    time2 = jax.random.uniform(jax.random.PRNGKey(1), (13,), dtype=jnp.float32, minval=0.0, maxval=1000.0)
    out2 = jax.block_until_ready(sinusoidal_position_embeddings(time2, 256))
    ref2 = _reference(time2, 256)
    assert out2.shape == (13, 256), out2.shape
    assert jnp.allclose(out2, ref2, atol=1e-5, rtol=1e-5), float(jnp.max(jnp.abs(out2 - ref2)))

    # Case 3: b >= 16 -> grid of 2 steps (both TCs on v7x) with a partial final block.
    time3 = jax.random.uniform(jax.random.PRNGKey(2), (40,), dtype=jnp.float32, minval=0.0, maxval=1000.0)
    out3 = jax.block_until_ready(sinusoidal_position_embeddings(time3, 32))
    ref3 = _reference(time3, 32)
    assert out3.shape == (40, 32), out3.shape
    assert jnp.allclose(out3, ref3, atol=5e-4, rtol=0.0), float(jnp.max(jnp.abs(out3 - ref3)))

    print("KERNEL_OK")
</pallas_src>

<mosaic_0001>
module attributes {stable_mosaic.version = 11 : i64} {
  func.func @_kernel_phase(%arg0: i32, %arg1: memref<8x1xf32, #tpu.memory_space<vmem>>, %arg2: memref<1x32xf32, #tpu.memory_space<vmem>>, %arg3: memref<8x32xf32, #tpu.memory_space<vmem>>) attributes {dimension_semantics = [#tpu.dimension_semantics<parallel>], iteration_bounds = array<i64: 1>, scalar_prefetch = 0 : i64, scratch_operands = 0 : i64, tpu.core_type = #tpu.core_type<tc>, window_params = [{transform_indices = @transform_0, window_bounds = array<i64: 8, 1>}, {pipeline_mode = #tpu.pipeline_mode<synchronous>, transform_indices = @transform_1, window_bounds = array<i64: 1, 32>}, {transform_indices = @transform_2, window_bounds = array<i64: 8, 32>}]} {
    %0 = tpu.iota {dimensions = array<i32: 1>} : vector<1x32xi32>
    %c16_i32 = arith.constant 16 : i32
    %1 = vector.broadcast %c16_i32 : i32 to vector<1x32xi32>
    %2 = arith.cmpi slt, %0, %1 : vector<1x32xi32>
    %cst = arith.constant 0.000000e+00 : f32
    %cst_0 = arith.constant 1.57079637 : f32
    %3 = vector.broadcast %cst : f32 to vector<1x32xf32>
    %4 = vector.broadcast %cst_0 : f32 to vector<1x32xf32>
    %5 = arith.select %2, %3, %4 : vector<1x32xi1>, vector<1x32xf32>
    %c0 = arith.constant 0 : index
    %c0_1 = arith.constant 0 : index
    %6 = vector.load %arg1[%c0, %c0_1] : memref<8x1xf32, #tpu.memory_space<vmem>>, vector<8x1xf32>
    %c0_2 = arith.constant 0 : index
    %c0_3 = arith.constant 0 : index
    %7 = vector.load %arg2[%c0_2, %c0_3] : memref<1x32xf32, #tpu.memory_space<vmem>>, vector<1x32xf32>
    %8 = vector.broadcast %6 : vector<8x1xf32> to vector<8x32xf32>
    %9 = vector.broadcast %7 : vector<1x32xf32> to vector<8x32xf32>
    %10 = arith.mulf %8, %9 : vector<8x32xf32>
    %11 = vector.broadcast %5 : vector<1x32xf32> to vector<8x32xf32>
    %12 = arith.addf %10, %11 : vector<8x32xf32>
    %13 = math.sin %12 : vector<8x32xf32>
    %c0_4 = arith.constant 0 : index
    %c0_5 = arith.constant 0 : index
    %14 = vector.load %arg3[%c0_4, %c0_5] : memref<8x32xf32, #tpu.memory_space<vmem>>, vector<8x32xf32>
    tpu.vector_store %arg3[%c0_4, %c0_5], %13 {strides = array<i32>} : memref<8x32xf32, #tpu.memory_space<vmem>>, vector<8x32xf32>,
    return
  }
  func.func @transform_0(%arg0: i32) -> (i32, i32) {
    %c0_i32 = arith.constant 0 : i32
    %c0_i32_0 = arith.constant 0 : i32
    return %arg0, %c0_i32 : i32, i32
  }
  func.func @transform_1(%arg0: i32) -> (i32, i32) {
    %c0_i32 = arith.constant 0 : i32
    %c0_i32_0 = arith.constant 0 : i32
    %c0_i32_1 = arith.constant 0 : i32
    return %c0_i32, %c0_i32_0 : i32, i32
  }
  func.func @transform_2(%arg0: i32) -> (i32, i32) {
    %c0_i32 = arith.constant 0 : i32
    %c0_i32_0 = arith.constant 0 : i32
    return %arg0, %c0_i32 : i32, i32
  }
}

</mosaic_0001>

<llo_original>
// kernel: tpu_custom_call.1
$region0: #{tpu_custom_call.1}
  #allocation0 [shape = 'u32[]', space=smem, size = 0x4, offset = 0x4, fixed_abs, tag = 'smem constant byte address 0x4 - core index']
  #allocation1 [shape = 'u32[144,128]{1,0:T(1,128)}', space=vmem, size = 0x12000, scoped, tag = 'internal scratch']
  %s0 = inlined_call_operand.vmem [shape: f32[8,1], index: 0, kind: input, shape index: {}]
  %s1 = inlined_call_operand.vmem [shape: f32[1,32], index: 1, kind: input, shape index: {}]
  %s2 = inlined_call_operand.hbm [shape: f32[8,32], index: 2, kind: output, shape index: {}]
  %s3 = sld [smem:[#allocation0]]
  $region18: #{tpu_custom_call.1} parent=0
    _
  %s5 = ssub.s32 1, %s3
  %s6 = scalar_select 0, %s5, %s3
  $region1: #{tpu_custom_call.1} parent=0
    #allocation2 [shape = 'u8[4096]{0}', space=vmem, size = 0x1000, scoped, tag = 'output window, operand 0, single buffered']
    #allocation3 [shape = 's32[1]{0}', space=sflag, size = 0x4, scoped, tag = 'scoped memory for tpu_custom_call.1']
    %7 = vsyncpa [#allocation3], 0
    // Predicated region
    $region2: #{tpu_custom_call.1} parent=1 // pred_check
      _
    $region3: #{tpu_custom_call.1} parent=1 // pred_check_branch
      %9 = sbr.rel (0) target = $region5
    $region4: #{tpu_custom_call.1} parent=1 // pred_region
      _
    $region5: #{tpu_custom_call.1} parent=1 // pred_fallthru
      _
    // Predicated region
    $region6: #{tpu_custom_call.1} parent=1 // pred_check
      _
    $region7: #{tpu_custom_call.1} parent=1 // pred_check_branch
      %11 = sbr.rel (0) target = $region9
    $region8: #{tpu_custom_call.1} parent=1 // pred_region
      _
    $region9: #{tpu_custom_call.1} parent=1 // pred_fallthru
      _
    %v12 = vlaneseq
    %v13 = vand.u32 %v12, 127
    %vm14 = vcmp.lt.s32.totalorder %v13, 16
    %v15 = vsel %vm14, 0.0, 1.5707964
    %v16 = vld [vmem:[%s0] sm:$0xff]
    %v17 = vld [vmem:[%s1] sm:$0x1]
    %19 = vset.pattern.permute.xlu0 0
    %20 = vperm.xlu0 %19, %v16
    %v21 = vpop.permute.xlu0 %20
    %v24 = vlaneseq
    %v25 = vshrl.u32 %v24, 7
    %v26 = vsub.s32 0, %v25
    %v27 = vrot.slane %v17, %v26
    %v29 = vmul.f32 %v21, %v27
    %v30 = vadd.f32 %v29, %v15
    %v31 = vand.u32 2147483647, %v30
    %vm32 = vcmp.le.f32.partialorder %v31, 0.7853982
    %vm33 = vcmp.lt.s32.totalorder %v30, 0
    %v34 = vand.u32 %v30, 2139095040
    %v35 = vshrl.u32 %v34, 23
    %v36 = vsub.s32 %v35, 127
    %v37 = vand.u32 2147483647, %v30
    %v38 = vand.u32 %v37, 8388607
    %v39 = vor.u32 %v38, 8388608
    %v40 = vsub.s32 0, %v39
    %v41 = vadd.s32 %v36, 1
    %vm42 = vcmp.gt.s32.totalorder %v41, 0
    %v43 = vsel %vm42, %v41, 0
    %v44 = vshrl.u32 %v43, 5
    %v45 = vand.u32 %v43, 31
    %v46 = vsub.s32 32, %v45
    %v47 = vshrl.u32 683565275, %v46
    %v48 = vshll.u32 683565275, %v45
    %v49 = vshrl.u32 2475754826, %v46
    %v50 = vor.u32 %v48, %v49
    %v51 = vshll.u32 2475754826, %v45
    %v52 = vshrl.u32 2131351028, %v46
    %v53 = vor.u32 %v51, %v52
    %v54 = vshll.u32 2131351028, %v45
    %v55 = vshrl.u32 2102212464, %v46
    %v56 = vor.u32 %v54, %v55
    %v57 = vshll.u32 2102212464, %v45
    %v58 = vshrl.u32 920167782, %v46
    %v59 = vor.u32 %v57, %v58
    %v60 = vshll.u32 920167782, %v45
    %v61 = vshrl.u32 1326507024, %v46
    %v62 = vor.u32 %v60, %v61
    %vm63 = vcmp.lt.s32.totalorder %v44, 1
    %vm64 = vcmp.lt.s32.totalorder %v44, 2
    %vm65 = vcmp.lt.s32.totalorder %v44, 3
    %vm66 = vcmp.lt.s32.totalorder %v44, 4
    %v67 = vsel %vm63, %v47, %v50
    %v68 = vsel %vm66, %v56, 2102212464
    %v69 = vsel %vm65, %v53, %v68
    %v70 = vsel %vm64, %v67, %v69
    %v71 = vsel %vm63, %v50, %v53
    %v72 = vsel %vm66, %v59, 920167782
    %v73 = vsel %vm65, %v56, %v72
    %v74 = vsel %vm64, %v71, %v73
    %v75 = vsel %vm63, %v53, %v56
    %v76 = vsel %vm66, %v62, 1326507024
    %v77 = vsel %vm65, %v59, %v76
    %v78 = vsel %vm64, %v75, %v77
    %v79 = vshll.u32 %v39, 8
    %v80 = vmul.u32.u64.compose %v79, %v78
    %v81 = vextract.low.u32 %v80
    %v82 = vextract.high.u32 %v80
    %v83 = vmul.u32.u64.compose %v79, %v74
    %v84 = vextract.low.u32 %v83
    %v85 = vextract.high.u32 %v83
    %v86 = vmul.u32 %v79, %v70
    %v87 = vadd.s32 %v82, %v84
    %vm88 = vc.u32 %v82, %v84
    %v89 = vadd.s32 %v85, 1
    %v90 = vsel %vm88, %v89, %v85
    %v91 = vadd.s32 %v86, %v90
    %v92 = vadd.s32 %v91, 536870912
    %v93 = vshrl.u32 %v92, 30
    %v94 = vshll.u32 %v93, 30
    %v95 = vsub.s32 %v91, %v94
    %vm96 = vcmp.lt.s32.totalorder %v95, 0
    %v97 = vsub.s32 0, %v95
    %v98 = vsel %vm96, %v97, %v95
    %v99 = vclz %v98
    %v100 = vsub.s32 %v99, 2
    %vm101 = vcmp.gt.s32.totalorder 0, %v100
    %v102 = vsel %vm101, 0, %v100
    %v103 = vsub.s32 32, %v102
    %v104 = vshll.u32 %v95, %v102
    %v105 = vshrl.u32 %v87, %v103
    %v106 = vor.u32 %v104, %v105
    %v107 = vsub.s32 4294967266, %v102
    %v108 = vadd.s32 %v107, 127
    %v109 = vshll.u32 %v108, 23
    %v110 = vor.u32 4788187, %v109
    %v111 = vand.u32 2147483647, %v110
    %v113 = vcvt.s32.f32 %v106
    %v114 = vmul.f32 %v113, %v111
    %v115 = vxor.u32 %v114, 2147483648
    %v116 = vsel %vm33, %v115, %v114
    %v117 = vsub.s32 4, %v93
    %v118 = vsel %vm33, %v117, %v93
    %v119 = vsel %vm32, %v30, %v116
    %v120 = vsel %vm32, 0, %v118
    %v121 = vcosq.f32.pop %v119
    %v122 = vsinq.f32.pop %v119
    %vm123 = vweird.f32 %v30
    %v124 = vadd.s32 %v120, 3
    %v125 = vand.u32 %v124, 3
    %vm126 = vcmp.lt.s32.totalorder %v125, 2
    %vm127 = vcmp.eq.s32.totalorder %v125, 0
    %v128 = vxor.u32 %v122, 2147483648
    %v129 = vsel %vm127, %v121, %v128
    %vm130 = vcmp.eq.s32.totalorder %v125, 2
    %v131 = vxor.u32 %v121, 2147483648
    %v132 = vsel %vm130, %v131, %v122
    %v133 = vsel %vm126, %v129, %v132
    %v134 = vsel %vm123, nan, %v133
    %vm135 = vcmask 261120
    %136 = vst.msk [vmem:[#allocation2] sm:$0xff] %vm135, %v134
    // Predicated region
    $region10: #{tpu_custom_call.1} parent=1 // pred_check
      _
    $region11: #{tpu_custom_call.1} parent=1 // pred_check_branch
      %138 = sbr.rel (0) target = $region13
    $region12: #{tpu_custom_call.1} parent=1 // pred_region
      %s140 = ssub.s32 128, 128
      %141 = vsyncadd [#allocation3], %s140
      %s143 = sshll.u32 [#allocation2], 4
      %s144 = int_to_ptr.vmem [resolvable:$true] %s143
      %146 = dma.vmem_to_hbm [thread:$0]  %s144, 128, %s2, [#allocation3]
    $region13: #{tpu_custom_call.1} parent=1 // pred_fallthru
      _
    // Predicated region
    $region14: #{tpu_custom_call.1} parent=1 // pred_check
      _
    $region15: #{tpu_custom_call.1} parent=1 // pred_check_branch
      %148 = sbr.rel (0) target = $region17
    $region16: #{tpu_custom_call.1} parent=1 // pred_region
      %149 = dma.done [#allocation3], 128
    $region17: #{tpu_custom_call.1} parent=1 // pred_fallthru
      _
    %150 = vsyncpa [#allocation3], 1

</llo_original>
